<compile_context>
chip_gen: v7x
topology: tpu7x:2x2x1
jax: 0.10.0
libtpu: 0.0.40
codegen_flags: <defaults>
</compile_context>

<pallas_src>
import functools

import jax
import jax.numpy as jnp
from jax.experimental import pallas as pl
from jax.experimental.pallas import tpu as pltpu

LEAKY_SLOPE = 0.2
EPS = 1e-5


# ----------------------- pltpu.roll orientation probe ------------------------
_ROLL_SIGN = None


def _pltpu_roll_sign():
    """+1 if pltpu.roll follows jnp.roll's shift convention, else -1.

    One tiny pallas_call, run once and cached.  Pins the rotate direction so
    the circular-conv taps cannot silently flip (which would transpose the 3x3
    stencil) if the convention differs across jax versions.
    """
    global _ROLL_SIGN
    if _ROLL_SIGN is None:
        def probe(x_ref, o_ref):
            o_ref[...] = pltpu.roll(x_ref[...], 1, axis=1)

        x = jnp.arange(8 * 128, dtype=jnp.float32).reshape(8, 128)
        out = pl.pallas_call(
            probe, out_shape=jax.ShapeDtypeStruct((8, 128), jnp.float32))(x)
        _ROLL_SIGN = 1 if bool(jnp.array_equal(out, jnp.roll(x, 1, axis=1))) else -1
    return _ROLL_SIGN


# ------------------------------ kernel helpers --------------------------------
def _leaky_relu(a):
    # slope in (0, 1)  ->  leaky_relu(a) == max(a, slope * a)
    return jnp.maximum(a, LEAKY_SLOPE * a)


def _instance_norm(a):
    # a: [C, H*W] f32 -- normalize each channel over the spatial (lane) axis.
    inv_n = 1.0 / a.shape[1]
    mean = jnp.sum(a, axis=1, keepdims=True) * inv_n
    c = a - mean                      # centered once, reused for var and output
    var = jnp.sum(c * c, axis=1, keepdims=True) * inv_n
    return c * jax.lax.rsqrt(var + EPS)


def _roll_flat(x, jnp_shift, sign):
    # jnp.roll(x, jnp_shift, axis=1) expressed with pltpu.roll (XLU rotate).
    hw = x.shape[1]
    s = (sign * jnp_shift) % hw
    if s == 0:
        return x
    return pltpu.roll(x, s, axis=1)


def _im2col_periodic(x, width, col_first, col_last, sign):
    """x: [C, H*W], row-major flattened spatial.  Returns [9*C, H*W] whose row
    block tap*C..tap*C+C-1 holds x circularly shifted by (dh-1, dw-1),
    tap = dh*3 + dw  (matching the [Co, 9*C] packed conv weights)."""
    pieces = []
    for rh in (-1, 0, 1):            # dh - 1  (row offset)
        for rw in (-1, 0, 1):        # dw - 1  (col offset)
            main_shift = -(rh * width + rw)
            main = _roll_flat(x, main_shift, sign)
            if rw == 0:
                pieces.append(main)
                continue
            # A flat roll wraps columns across rows; fix the one wrapped column.
            fix = _roll_flat(x, main_shift + (width if rw > 0 else -width), sign)
            mask = col_last if rw > 0 else col_first
            pieces.append(jnp.where(mask, fix, main))
    return jnp.concatenate(pieces, axis=0)


def _conv_block(x, w_ref, b_ref, width, col_first, col_last, sign):
    # periodic pad -> conv3x3 -> instance norm -> leaky relu, one MXU matmul.
    patches = _im2col_periodic(x, width, col_first, col_last, sign)
    h = jnp.dot(w_ref[...], patches, preferred_element_type=jnp.float32)
    h = h + b_ref[...]
    return _leaky_relu(_instance_norm(h))


# --------------------------------- kernels ------------------------------------
def _resblock_kernel_learned(x_ref, col_ref, w0_ref, b0_ref, w1_ref, b1_ref,
                             ws_ref, out_ref, *, width, sign):
    x = x_ref[0]                                       # [Cin_p, H*W]
    col = col_ref[...]                                 # [1, H*W] int32
    col_first = col == 0
    col_last = col == width - 1

    # learned shortcut: 1x1 conv (no bias) -> instance norm -> leaky relu
    xs = _leaky_relu(_instance_norm(
        jnp.dot(ws_ref[...], x, preferred_element_type=jnp.float32)))

    dx = _conv_block(x, w0_ref, b0_ref, width, col_first, col_last, sign)
    dx = _conv_block(dx.astype(w1_ref.dtype), w1_ref, b1_ref, width,
                     col_first, col_last, sign)
    out_ref[0] = (xs + dx).astype(out_ref.dtype)


def _resblock_kernel_identity(x_ref, col_ref, w0_ref, b0_ref, w1_ref, b1_ref,
                              out_ref, *, width, sign):
    x = x_ref[0]
    col = col_ref[...]
    col_first = col == 0
    col_last = col == width - 1

    dx = _conv_block(x, w0_ref, b0_ref, width, col_first, col_last, sign)
    dx = _conv_block(dx.astype(w1_ref.dtype), w1_ref, b1_ref, width,
                     col_first, col_last, sign)
    out_ref[0] = (x.astype(jnp.float32) + dx).astype(out_ref.dtype)


# --------------------------------- wrapper -------------------------------------
def _round_up8(c):
    return ((c + 7) // 8) * 8


def stream_resnet_block_periodic(x_nchw, params, *, compute_dtype=jnp.float32):
    """params = (w0 [Cmid,Cin,3,3], b0 [Cmid], w1 [Cout,Cmid,3,3], b1 [Cout],
    ws [Cout,Cin,1,1] or None).  Weights are already spectral-normalized.
    compute_dtype: dtype of activations/weights feeding the MXU (bfloat16 is
    recommended on v6e/v7x; accumulation and norm stats stay in float32)."""
    w0, b0, w1, b1, ws = params
    N, Cin, H, W = x_nchw.shape
    Cmid, Cout = w0.shape[0], w1.shape[0]
    HW = H * W
    learned = ws is not None
    Cin_p, Cm_p, Co_p = _round_up8(Cin), _round_up8(Cmid), _round_up8(Cout)
    sign = _pltpu_roll_sign()

    # NCHW -> [N, C_pad, H*W]: no transpose; channels in sublanes, spatial in lanes.
    x = jnp.pad(x_nchw.astype(jnp.float32),
                ((0, 0), (0, Cin_p - Cin), (0, 0), (0, 0)))
    x = x.reshape(N, Cin_p, HW).astype(compute_dtype)

    def conv_weight(w, cop, cip):
        co, ci = w.shape[0], w.shape[1]
        wt = jnp.transpose(w.astype(jnp.float32), (0, 2, 3, 1))      # [co,3,3,ci]
        wt = jnp.pad(wt, ((0, cop - co), (0, 0), (0, 0), (0, cip - ci)))
        return wt.reshape(cop, 9 * cip).astype(compute_dtype)        # [cop, 9*cip]

    w0k = conv_weight(w0, Cm_p, Cin_p)
    w1k = conv_weight(w1, Co_p, Cm_p)
    b0k = jnp.pad(b0.astype(jnp.float32), (0, Cm_p - Cmid)).reshape(Cm_p, 1)
    b1k = jnp.pad(b1.astype(jnp.float32), (0, Co_p - Cout)).reshape(Co_p, 1)
    col_ids = (jnp.arange(HW, dtype=jnp.int32) % W).reshape(1, HW)

    in_specs = [
        pl.BlockSpec((1, Cin_p, HW), lambda n: (n, 0, 0)),
        pl.BlockSpec((1, HW), lambda n: (0, 0)),
        pl.BlockSpec((Cm_p, 9 * Cin_p), lambda n: (0, 0)),
        pl.BlockSpec((Cm_p, 1), lambda n: (0, 0)),
        pl.BlockSpec((Co_p, 9 * Cm_p), lambda n: (0, 0)),
        pl.BlockSpec((Co_p, 1), lambda n: (0, 0)),
    ]
    args = [x, col_ids, w0k, b0k, w1k, b1k]
    if learned:
        wsk = jnp.pad(ws[:, :, 0, 0].astype(jnp.float32),
                      ((0, Co_p - Cout), (0, Cin_p - Cin))).astype(compute_dtype)
        in_specs.append(pl.BlockSpec((Co_p, Cin_p), lambda n: (0, 0)))
        args.append(wsk)
        kernel = functools.partial(_resblock_kernel_learned, width=W, sign=sign)
    else:
        assert Cin_p == Co_p, "identity shortcut requires fin == fout"
        kernel = functools.partial(_resblock_kernel_identity, width=W, sign=sign)

    # TODO(synk): for production-size H*W on v7x (64 MiB VMEM), tile H spatially
    # with a 1-row halo and switch instance-norm to a two-pass scratch
    # accumulator; at the current sizes one full sample per step fits easily.
    out = pl.pallas_call(
        kernel,
        out_shape=jax.ShapeDtypeStruct((N, Co_p, HW), jnp.float32),
        grid_spec=pltpu.PrefetchScalarGridSpec(
            num_scalar_prefetch=0,
            grid=(N,),
            in_specs=in_specs,
            out_specs=pl.BlockSpec((1, Co_p, HW), lambda n: (n, 0, 0)),
        ),
        compiler_params=pltpu.CompilerParams(
            dimension_semantics=("parallel",)),
    )(*args)
    return out[:, :Cout, :].reshape(N, Cout, H, W)


# ------------------------- parameter setup (glue) ------------------------------
def spectral_normalize(w, n_iter=64):
    # Weight reparametrization from nn.utils.parametrizations.spectral_norm:
    # divide the weight (reshaped to [out, -1]) by its largest singular value.
    # (Converged power iteration instead of PyTorch's single stateful step.)
    mat = w.reshape(w.shape[0], -1).astype(jnp.float32)
    v = jnp.ones((mat.shape[1],), jnp.float32) / jnp.sqrt(mat.shape[1])
    u = jnp.ones((mat.shape[0],), jnp.float32) / jnp.sqrt(mat.shape[0])
    for _ in range(n_iter):
        u = mat @ v
        u = u / (jnp.linalg.norm(u) + 1e-12)
        v = mat.T @ u
        v = v / (jnp.linalg.norm(v) + 1e-12)
    sigma = u @ (mat @ v)
    return (w / sigma).astype(jnp.float32)


def init_params(key, fin, fout):
    fmiddle = fin
    k0, k1, k2, k3, k4 = jax.random.split(key, 5)
    w0 = 0.2 * jax.random.normal(k0, (fmiddle, fin, 3, 3), jnp.float32)
    b0 = 0.1 * jax.random.normal(k1, (fmiddle,), jnp.float32)
    w1 = 0.2 * jax.random.normal(k2, (fout, fmiddle, 3, 3), jnp.float32)
    b1 = 0.1 * jax.random.normal(k3, (fout,), jnp.float32)
    ws = None
    if fin != fout:
        ws = 0.2 * jax.random.normal(k4, (fout, fin, 1, 1), jnp.float32)
        ws = spectral_normalize(ws)
    return (spectral_normalize(w0), b0, spectral_normalize(w1), b1, ws)


# ----------------------------- pure-JAX reference -------------------------------
def reference_forward(x, params):
    w0, b0, w1, b1, ws = params

    def ppad(a):
        return jnp.pad(a, ((0, 0), (0, 0), (1, 1), (1, 1)), mode="wrap")

    def conv(a, w, b=None):
        out = jax.lax.conv_general_dilated(
            a, w, (1, 1), "VALID",
            dimension_numbers=("NCHW", "OIHW", "NCHW"))
        if b is not None:
            out = out + b[None, :, None, None]
        return out

    def inorm(a):
        mean = a.mean(axis=(2, 3), keepdims=True)
        var = ((a - mean) ** 2).mean(axis=(2, 3), keepdims=True)
        return (a - mean) * jax.lax.rsqrt(var + EPS)

    def lrelu(a):
        return jnp.where(a > 0, a, LEAKY_SLOPE * a)

    x_s = lrelu(inorm(conv(x, ws))) if ws is not None else x
    dx = lrelu(inorm(conv(ppad(x), w0, b0)))
    dx = lrelu(inorm(conv(ppad(dx), w1, b1)))
    return x_s + dx


# ------------------------------------ main ---------------------------------------
if __name__ == "__main__":
    key = jax.random.PRNGKey(0)
    kx, kp, kx2, kp2 = jax.random.split(key, 4)

    # 1) learned shortcut (fin != fout), strict f32 check
    N, fin, fout, H, W = 2, 4, 8, 16, 16
    x = jax.random.normal(kx, (N, fin, H, W), jnp.float32)
    params = init_params(kp, fin, fout)
    out = jax.block_until_ready(stream_resnet_block_periodic(x, params))
    ref = jax.block_until_ready(reference_forward(x, params))
    assert out.shape == (N, fout, H, W)
    assert jnp.allclose(out, ref, atol=1e-4, rtol=1e-4), (
        float(jnp.max(jnp.abs(out - ref))))

    # 2) identity shortcut (fin == fout), strict f32 check
    x2 = jax.random.normal(kx2, (N, fout, H, W), jnp.float32)
    params2 = init_params(kp2, fout, fout)
    out2 = jax.block_until_ready(stream_resnet_block_periodic(x2, params2))
    ref2 = jax.block_until_ready(reference_forward(x2, params2))
    assert jnp.allclose(out2, ref2, atol=1e-4, rtol=1e-4), (
        float(jnp.max(jnp.abs(out2 - ref2))))

    # 3) bf16 MXU-operand path (v6e/v7x): compare against the reference fed the
    #    same bf16-quantized activations/weights (f32 accumulation on both sides).
    out_bf = jax.block_until_ready(
        stream_resnet_block_periodic(x, params, compute_dtype=jnp.bfloat16))
    q = lambda a: a.astype(jnp.bfloat16).astype(jnp.float32)
    w0, b0, w1, b1, ws = params
    ref_bf = jax.block_until_ready(
        reference_forward(q(x), (q(w0), b0, q(w1), b1, q(ws))))
    assert jnp.allclose(out_bf, ref_bf, atol=5e-2, rtol=5e-2), (
        float(jnp.max(jnp.abs(out_bf - ref_bf))))

    print("KERNEL_OK")
</pallas_src>

<mosaic_0001>
module attributes {stable_mosaic.version = 11 : i64} {
  func.func @probe(%arg0: memref<8x128xf32, #tpu.memory_space<vmem>>, %arg1: memref<8x128xf32, #tpu.memory_space<vmem>>) attributes {dimension_semantics = [], scalar_prefetch = 0 : i64, scratch_operands = 0 : i64, tpu.core_type = #tpu.core_type<tc>} {
    %c0 = arith.constant 0 : index
    %c0_0 = arith.constant 0 : index
    %0 = vector.load %arg0[%c0, %c0_0] : memref<8x128xf32, #tpu.memory_space<vmem>>, vector<8x128xf32>
    %c1_i32 = arith.constant 1 : i32
    %1 = tpu.dynamic_rotate %0 by %c1_i32 dim 1 : vector<8x128xf32>, i32 -> vector<8x128xf32>
    %c0_1 = arith.constant 0 : index
    %c0_2 = arith.constant 0 : index
    %2 = vector.load %arg1[%c0_1, %c0_2] : memref<8x128xf32, #tpu.memory_space<vmem>>, vector<8x128xf32>
    tpu.vector_store %arg1[%c0_1, %c0_2], %1 {strides = array<i32>} : memref<8x128xf32, #tpu.memory_space<vmem>>, vector<8x128xf32>,
    return
  }
}

</mosaic_0001>

<llo_original>
// kernel: tpu_custom_call.1
$region0: #{tpu_custom_call.1}
  #allocation0 [shape = 'u32[]', space=smem, size = 0x4, offset = 0x4, fixed_abs, tag = 'smem constant byte address 0x4 - core index']
  #allocation1 [shape = 'u32[144,128]{1,0:T(1,128)}', space=vmem, size = 0x12000, scoped, tag = 'internal scratch']
  %s0 = inlined_call_operand.hbm [shape: f32[8,128], index: 0, kind: input, shape index: {}]
  %s1 = inlined_call_operand.hbm [shape: f32[8,128], index: 1, kind: output, shape index: {}]
  %s2 = sld [smem:[#allocation0]]
  $region18: #{tpu_custom_call.1} parent=0
    _
  %s4 = ssub.s32 1, %s2
  %s5 = scalar_select 0, %s4, %s2
  $region1: #{tpu_custom_call.1} parent=0
    #allocation2 [shape = 'u8[4096]{0}', space=vmem, size = 0x1000, scoped, tag = 'input window, operand 0, single buffered']
    #allocation3 [shape = 's32[1]{0}', space=sflag, size = 0x4, scoped, tag = 'scoped memory for tpu_custom_call.1']
    #allocation4 [shape = 's32[1]{0}', space=sflag, size = 0x4, scoped, tag = 'scoped memory for tpu_custom_call.1']
    #allocation5 [shape = 'u8[4096]{0}', space=vmem, size = 0x1000, scoped, tag = 'output window, operand 0, single buffered']
    %6 = vsyncpa [#allocation3], 0
    %7 = vsyncpa [#allocation4], 0
    // Predicated region
    $region2: #{tpu_custom_call.1} parent=1 // pred_check
      _
    $region3: #{tpu_custom_call.1} parent=1 // pred_check_branch
      %9 = sbr.rel (0) target = $region5
    $region4: #{tpu_custom_call.1} parent=1 // pred_region
      %s11 = ssub.s32 128, 128
      %12 = vsyncadd [#allocation3], %s11
      %s14 = sshll.u32 [#allocation2], 4
      %s15 = int_to_ptr.vmem [resolvable:$true] %s14
      %17 = dma.hbm_to_vmem [thread:$0]  %s0, 128, %s15, [#allocation3]
    $region5: #{tpu_custom_call.1} parent=1 // pred_fallthru
      _
    // Predicated region
    $region6: #{tpu_custom_call.1} parent=1 // pred_check
      _
    $region7: #{tpu_custom_call.1} parent=1 // pred_check_branch
      %19 = sbr.rel (0) target = $region9
    $region8: #{tpu_custom_call.1} parent=1 // pred_region
      %20 = dma.done [#allocation3], 128
    $region9: #{tpu_custom_call.1} parent=1 // pred_fallthru
      _
    %v21 = vld [vmem:[#allocation2] sm:$0xff]
    %22 = vrot.lane.b32.xlu0 %v21, 1
    %v23 = vpop.permute.xlu0 %22
    %24 = vst [vmem:[#allocation5] sm:$0xff] %v23
    // Predicated region
    $region10: #{tpu_custom_call.1} parent=1 // pred_check
      _
    $region11: #{tpu_custom_call.1} parent=1 // pred_check_branch
      %26 = sbr.rel (0) target = $region13
    $region12: #{tpu_custom_call.1} parent=1 // pred_region
      %s28 = ssub.s32 128, 128
      %29 = vsyncadd [#allocation4], %s28
      %s31 = sshll.u32 [#allocation5], 4
      %s32 = int_to_ptr.vmem [resolvable:$true] %s31
      %34 = dma.vmem_to_hbm [thread:$0]  %s32, 128, %s1, [#allocation4]
    $region13: #{tpu_custom_call.1} parent=1 // pred_fallthru
      _
    // Predicated region
    $region14: #{tpu_custom_call.1} parent=1 // pred_check
      _
    $region15: #{tpu_custom_call.1} parent=1 // pred_check_branch
      %36 = sbr.rel (0) target = $region17
    $region16: #{tpu_custom_call.1} parent=1 // pred_region
      %37 = dma.done [#allocation4], 128
    $region17: #{tpu_custom_call.1} parent=1 // pred_fallthru
      _
    %38 = vsyncpa [#allocation3], 1
    %39 = vsyncpa [#allocation4], 1

</llo_original>
